<compile_context>
chip_gen: v5e
topology: v5e:2x2
jax: 0.10.0
libtpu: 0.0.40
codegen_flags: <defaults>
</compile_context>

<pallas_src>
import math
import jax
import jax.numpy as jnp
from jax.experimental import pallas as pl
from jax.experimental.pallas import tpu as pltpu
from typing import NamedTuple

_INV_SQRT2 = 1.0 / math.sqrt(2.0)
_LANE = 128
_ROW_Q = 16                       # row (sublane) quantum for bf16-packed tiles
_VMEM_TILE_BUDGET = 36 << 20      # target tile working set (v7x: 64 MiB/TC physical)
_VMEM_LIMIT_CAP = 48 << 20        # leave ~16 MiB headroom for compiler scratch on v7x


def _round_up(x, m):
    return (x + m - 1) // m * m


# --------------------------------------------------------------------------
# Kernel
# --------------------------------------------------------------------------
def _mlp_kernel(x_ref, w1_ref, b1_ref, w2_ref, b2_ref, o_ref, acc_ref):
    # x_ref : (tm, D_p)   bf16 token tile
    # w1_ref: (D_p, th)   bf16,  b1_ref: (1, th)   f32
    # w2_ref: (th, Do_p)  bf16,  b2_ref: (1, Do_p) f32
    # o_ref : (tm, Do_p)  output tile
    # acc_ref: (tm, Do_p) f32 accumulator scratch (persists over the h axis)
    h_idx = pl.program_id(1)

    @pl.when(h_idx == 0)
    def _init():
        # Fold the fc2 bias into the accumulator init (saves one (tm, Do) add
        # in the epilogue).
        acc_ref[...] = jnp.broadcast_to(b2_ref[...], acc_ref.shape)

    # fc1 partial: (tm, D_p) @ (D_p, th) -> f32 on the MXU
    h = jnp.dot(x_ref[...], w1_ref[...], preferred_element_type=jnp.float32)
    h = h + b1_ref[...]

    # exact erf-based GELU in f32 (matches torch.nn.GELU default).
    h = 0.5 * h * (1.0 + jax.lax.erf(h * jnp.float32(_INV_SQRT2)))

    # Dropout p=0.0 -> identity  # TODO(synk): p>0 training dropout would need pltpu.prng

    # fc2 partial: (tm, th) @ (th, Do_p), accumulated over the H tiles
    acc_ref[...] += jnp.dot(h.astype(w2_ref.dtype), w2_ref[...],
                            preferred_element_type=jnp.float32)

    @pl.when(h_idx == pl.num_programs(1) - 1)
    def _finalize():
        o_ref[...] = acc_ref[...].astype(o_ref.dtype)


# --------------------------------------------------------------------------
# Parameter preparation (hoisted out of the hot path)
# --------------------------------------------------------------------------
class MlpParams(NamedTuple):
    w1: jax.Array   # (D_p, H_p)  bf16
    b1: jax.Array   # (1, H_p)    f32
    w2: jax.Array   # (H_p, Do_p) bf16
    b2: jax.Array   # (1, Do_p)   f32
    d_in: int
    d_hidden: int
    d_out: int


def prepare_mlp_params(w1, b1, w2, b2):
    """Pad feature dims to multiples of 128 and cast weights to bf16 once."""
    D, H = w1.shape
    Dout = w2.shape[1]
    D_p, H_p, Do_p = (_round_up(v, _LANE) for v in (D, H, Dout))

    def pad2(a, rows, cols):
        pr, pc = rows - a.shape[0], cols - a.shape[1]
        return a if (pr == 0 and pc == 0) else jnp.pad(a, ((0, pr), (0, pc)))

    w1p = pad2(w1, D_p, H_p).astype(jnp.bfloat16)
    w2p = pad2(w2, H_p, Do_p).astype(jnp.bfloat16)
    b1p = pad2(b1.reshape(1, H), 1, H_p).astype(jnp.float32)
    b2p = pad2(b2.reshape(1, Dout), 1, Do_p).astype(jnp.float32)
    return MlpParams(w1p, b1p, w2p, b2p, D, H, Dout)


# --------------------------------------------------------------------------
# Tile selection
# --------------------------------------------------------------------------
def _vmem_estimate(tm, th, D_p, Do_p, out_bytes, weight_bufs):
    return (2 * tm * D_p * 2                  # x tiles (bf16, double-buffered)
            + weight_bufs * D_p * th * 2      # W1 slice(s) (bf16)
            + weight_bufs * 8 * th * 4        # b1 (f32, sublane-padded)
            + weight_bufs * th * Do_p * 2     # W2 slice(s) (bf16)
            + 8 * Do_p * 4                    # b2 (f32)
            + 2 * tm * Do_p * out_bytes       # output tiles
            + tm * Do_p * 4)                  # f32 accumulator scratch


def _select_tiles(M, D_p, H_p, Do_p, out_bytes, tm_max, single_buffer_ok):
    # --- token tile: minimize M padding, but keep >=2 parallel steps when the
    #     row count allows it so both v7x TensorCores get work.
    tm_cap = max(_ROW_Q, min(tm_max, _round_up(M, _ROW_Q)))
    steps = pl.cdiv(M, tm_cap)
    if steps == 1 and M >= 2 * _ROW_Q:
        steps = 2
    tm = _round_up(pl.cdiv(M, steps), _ROW_Q)

    w_bufs = 1 if single_buffer_ok else 2
    while True:
        # Preferred: W1/W2 fully VMEM-resident (hidden axis collapses to one
        # step) -> weights are DMA'd from HBM once, kernel becomes MXU-bound.
        est = _vmem_estimate(tm, H_p, D_p, Do_p, out_bytes, w_bufs)
        if est <= _VMEM_TILE_BUDGET:
            return tm, H_p, est
        # Otherwise stream the hidden dim in the largest slice that fits
        # (double-buffered).  th must divide H_p (H_p is a multiple of 128).
        for th in (2048, 1024, 512, 256, 128):
            if th >= H_p or H_p % th != 0:
                continue
            est = _vmem_estimate(tm, th, D_p, Do_p, out_bytes, 2)
            if est <= _VMEM_TILE_BUDGET:
                return tm, th, est
        if tm <= _ROW_Q:
            th = 128 if (H_p > 128 and H_p % 128 == 0) else H_p
            return tm, th, _vmem_estimate(tm, th, D_p, Do_p, out_bytes, 2)
        tm = max(_ROW_Q, _round_up(tm // 2, _ROW_Q))


# --------------------------------------------------------------------------
# Wrapper
# --------------------------------------------------------------------------
def mlp_pallas_prepared(x, params: MlpParams, *, tm_max=512, out_dtype=None):
    """x: (B, N, D).  Returns (B, N, Dout) in out_dtype (default x.dtype)."""
    B, N, D = x.shape
    assert D == params.d_in, "input feature dim mismatch"
    out_dtype = out_dtype or x.dtype
    Dout = params.d_out
    D_p, H_p = params.w1.shape
    Do_p = params.w2.shape[1]
    M = B * N
    out_bytes = jnp.dtype(out_dtype).itemsize

    xf = x.reshape(M, D)

    def run(single_buffer):
        tm, th, est = _select_tiles(M, D_p, H_p, Do_p, out_bytes, tm_max,
                                    single_buffer)
        M_p = _round_up(M, tm)
        n_h = H_p // th
        grid = (M_p // tm, n_h)

        xp = xf
        if (M_p - M) or (D_p - D):
            xp = jnp.pad(xf, ((0, M_p - M), (0, D_p - D)))
        xp = xp.astype(jnp.bfloat16)

        # The re-tiling loop above keeps est <= budget; never let the limit
        # fall below the actual estimate (no silent clamp).
        vmem_limit = int(max(min(est + (8 << 20), _VMEM_LIMIT_CAP),
                             est + (2 << 20), 24 << 20))

        # Single-buffer operands whose block index never changes (no point
        # double-buffering a constant block) -> frees VMEM on v7x.
        w_mode = pl.Buffered(1) if (single_buffer and n_h == 1) else None
        b2_mode = pl.Buffered(1) if single_buffer else None

        in_specs = [
            pl.BlockSpec((tm, D_p), lambda i, h: (i, 0)),                      # x tile
            pl.BlockSpec((D_p, th), lambda i, h: (0, h), pipeline_mode=w_mode),  # W1
            pl.BlockSpec((1, th), lambda i, h: (0, h), pipeline_mode=w_mode),    # b1
            pl.BlockSpec((th, Do_p), lambda i, h: (h, 0), pipeline_mode=w_mode),  # W2
            pl.BlockSpec((1, Do_p), lambda i, h: (0, 0), pipeline_mode=b2_mode),  # b2
        ]

        return pl.pallas_call(
            _mlp_kernel,
            out_shape=jax.ShapeDtypeStruct((M_p, Do_p), out_dtype),
            grid_spec=pltpu.PrefetchScalarGridSpec(
                num_scalar_prefetch=0,
                grid=grid,
                in_specs=in_specs,
                out_specs=pl.BlockSpec((tm, Do_p), lambda i, h: (i, 0)),
                scratch_shapes=[pltpu.VMEM((tm, Do_p), jnp.float32)],
            ),
            compiler_params=pltpu.CompilerParams(
                dimension_semantics=("parallel", "arbitrary"),
                vmem_limit_bytes=vmem_limit,
            ),
        )(xp, params.w1, params.b1, params.w2, params.b2)

    try:
        out = run(single_buffer=True)
    except Exception:
        # pl.Buffered(1) not supported / VMEM too tight on this generation:
        # retry with conservative double-buffered tiling.
        out = run(single_buffer=False)

    return out[:M, :Dout].reshape(B, N, Dout)


def mlp_pallas(x, w1, b1, w2, b2, **kwargs):
    """Convenience wrapper: pads/casts weights per call (prefer the prepared path)."""
    return mlp_pallas_prepared(x, prepare_mlp_params(w1, b1, w2, b2), **kwargs)


def mlp_reference(x, w1, b1, w2, b2):
    h = jnp.einsum("bnd,dh->bnh", x, w1) + b1
    h = 0.5 * h * (1.0 + jax.lax.erf(h / jnp.sqrt(2.0)))
    return jnp.einsum("bnh,ho->bno", h, w2) + b2


if __name__ == "__main__":
    # Small ViT-like shapes: batch=2, seq=8, in=32, hidden=64, out=32
    B, N, D = 2, 8, 32
    H = 64
    Dout = D

    key = jax.random.PRNGKey(0)
    kx, k1, kb1, k2, kb2 = jax.random.split(key, 5)

    x = jax.random.normal(kx, (B, N, D), dtype=jnp.float32)

    # Deterministic init mimicking nn.Linear (uniform(-1/sqrt(fan_in), ...))
    lim1 = 1.0 / math.sqrt(D)
    w1 = jax.random.uniform(k1, (D, H), jnp.float32, -lim1, lim1)
    b1 = jax.random.uniform(kb1, (H,), jnp.float32, -lim1, lim1)
    lim2 = 1.0 / math.sqrt(H)
    w2 = jax.random.uniform(k2, (H, Dout), jnp.float32, -lim2, lim2)
    b2 = jax.random.uniform(kb2, (Dout,), jnp.float32, -lim2, lim2)

    # Hoist the padding + bf16 cast of the weights out of the hot path.
    params = prepare_mlp_params(w1, b1, w2, b2)

    out = mlp_pallas_prepared(x, params)
    out = jax.block_until_ready(out)

    ref = mlp_reference(x, w1, b1, w2, b2)
    assert out.shape == (B, N, Dout)
    # Tolerance loosened vs a pure-f32 torch Mlp because matmul inputs are
    # cast to bf16 (accumulation stays f32 on the MXU).
    assert jnp.allclose(out, ref, atol=5e-2, rtol=5e-2), "mismatch vs reference"

    print("KERNEL_OK")
</pallas_src>

<mosaic_0001>
module attributes {stable_mosaic.version = 11 : i64} {
  func.func @_mlp_kernel(%arg0: i32, %arg1: i32, %arg2: memref<16x128xbf16, #tpu.memory_space<vmem>>, %arg3: memref<128x128xbf16, #tpu.memory_space<vmem>>, %arg4: memref<1x128xf32, #tpu.memory_space<vmem>>, %arg5: memref<128x128xbf16, #tpu.memory_space<vmem>>, %arg6: memref<1x128xf32, #tpu.memory_space<vmem>>, %arg7: memref<16x128xf32, #tpu.memory_space<vmem>>, %arg8: memref<16x128xf32, #tpu.memory_space<vmem>>) attributes {dimension_semantics = [#tpu.dimension_semantics<parallel>, #tpu.dimension_semantics<arbitrary>], iteration_bounds = array<i64: 1, 1>, scalar_prefetch = 0 : i64, scratch_operands = 1 : i64, tpu.core_type = #tpu.core_type<tc>, window_params = [{transform_indices = @transform_0, window_bounds = array<i64: 16, 128>}, {pipeline_mode = #tpu.pipeline_mode<synchronous>, transform_indices = @transform_1, window_bounds = array<i64: 128, 128>}, {pipeline_mode = #tpu.pipeline_mode<synchronous>, transform_indices = @transform_2, window_bounds = array<i64: 1, 128>}, {pipeline_mode = #tpu.pipeline_mode<synchronous>, transform_indices = @transform_3, window_bounds = array<i64: 128, 128>}, {pipeline_mode = #tpu.pipeline_mode<synchronous>, transform_indices = @transform_4, window_bounds = array<i64: 1, 128>}, {transform_indices = @transform_5, window_bounds = array<i64: 16, 128>}]} {
    %c0_i32 = arith.constant 0 : i32
    %0 = arith.cmpi eq, %arg1, %c0_i32 : i32
    %1 = arith.extui %0 : i1 to i32
    %c0_i32_0 = arith.constant 0 : i32
    %2 = arith.cmpi ne, %1, %c0_i32_0 : i32
    scf.if %2 {
      %c0_18 = arith.constant 0 : index
      %c0_19 = arith.constant 0 : index
      %26 = vector.load %arg6[%c0_18, %c0_19] : memref<1x128xf32, #tpu.memory_space<vmem>>, vector<1x128xf32>
      %27 = vector.shape_cast %26 : vector<1x128xf32> to vector<1x128xf32>
      %28 = vector.broadcast %27 : vector<1x128xf32> to vector<16x128xf32>
      %c0_20 = arith.constant 0 : index
      %c0_21 = arith.constant 0 : index
      %29 = vector.load %arg8[%c0_20, %c0_21] : memref<16x128xf32, #tpu.memory_space<vmem>>, vector<16x128xf32>
      tpu.vector_store %arg8[%c0_20, %c0_21], %28 {strides = array<i32>} : memref<16x128xf32, #tpu.memory_space<vmem>>, vector<16x128xf32>,
    } else {
    }
    %c0 = arith.constant 0 : index
    %c0_1 = arith.constant 0 : index
    %3 = vector.load %arg2[%c0, %c0_1] : memref<16x128xbf16, #tpu.memory_space<vmem>>, vector<16x128xbf16>
    %c0_2 = arith.constant 0 : index
    %c0_3 = arith.constant 0 : index
    %4 = vector.load %arg3[%c0_2, %c0_3] : memref<128x128xbf16, #tpu.memory_space<vmem>>, vector<128x128xbf16>
    %cst = arith.constant dense<0.000000e+00> : vector<16x128xf32>
    %5 = tpu.matmul %3, %4, %cst {dimension_numbers = #tpu.dot_dimension_numbers<[1], [0], [0], [1], [0, 0, 1, 1], [], []>} : vector<16x128xbf16>, vector<128x128xbf16>, vector<16x128xf32> -> vector<16x128xf32>
    %c0_4 = arith.constant 0 : index
    %c0_5 = arith.constant 0 : index
    %6 = vector.load %arg4[%c0_4, %c0_5] : memref<1x128xf32, #tpu.memory_space<vmem>>, vector<1x128xf32>
    %7 = vector.broadcast %6 : vector<1x128xf32> to vector<16x128xf32>
    %8 = arith.addf %5, %7 : vector<16x128xf32>
    %cst_6 = arith.constant 5.000000e-01 : f32
    %9 = vector.broadcast %cst_6 : f32 to vector<16x128xf32>
    %10 = arith.mulf %9, %8 : vector<16x128xf32>
    %cst_7 = arith.constant 0.707106769 : f32
    %11 = vector.broadcast %cst_7 : f32 to vector<16x128xf32>
    %12 = arith.mulf %8, %11 : vector<16x128xf32>
    %13 = math.erf %12 : vector<16x128xf32>
    %cst_8 = arith.constant 1.000000e+00 : f32
    %14 = vector.broadcast %cst_8 : f32 to vector<16x128xf32>
    %15 = arith.addf %14, %13 : vector<16x128xf32>
    %16 = arith.mulf %10, %15 : vector<16x128xf32>
    %c0_9 = arith.constant 0 : index
    %c0_10 = arith.constant 0 : index
    %17 = vector.load %arg8[%c0_9, %c0_10] : memref<16x128xf32, #tpu.memory_space<vmem>>, vector<16x128xf32>
    %18 = arith.truncf %16 : vector<16x128xf32> to vector<16x128xbf16>
    %c0_11 = arith.constant 0 : index
    %c0_12 = arith.constant 0 : index
    %19 = vector.load %arg5[%c0_11, %c0_12] : memref<128x128xbf16, #tpu.memory_space<vmem>>, vector<128x128xbf16>
    %cst_13 = arith.constant dense<0.000000e+00> : vector<16x128xf32>
    %20 = tpu.matmul %18, %19, %cst_13 {dimension_numbers = #tpu.dot_dimension_numbers<[1], [0], [0], [1], [0, 0, 1, 1], [], []>} : vector<16x128xbf16>, vector<128x128xbf16>, vector<16x128xf32> -> vector<16x128xf32>
    %21 = arith.addf %17, %20 : vector<16x128xf32>
    %c0_14 = arith.constant 0 : index
    %c0_15 = arith.constant 0 : index
    %22 = vector.load %arg8[%c0_14, %c0_15] : memref<16x128xf32, #tpu.memory_space<vmem>>, vector<16x128xf32>
    tpu.vector_store %arg8[%c0_14, %c0_15], %21 {strides = array<i32>} : memref<16x128xf32, #tpu.memory_space<vmem>>, vector<16x128xf32>,
    %c0_i32_16 = arith.constant 0 : i32
    %23 = arith.cmpi eq, %arg1, %c0_i32_16 : i32
    %24 = arith.extui %23 : i1 to i32
    %c0_i32_17 = arith.constant 0 : i32
    %25 = arith.cmpi ne, %24, %c0_i32_17 : i32
    scf.if %25 {
      %c0_18 = arith.constant 0 : index
      %c0_19 = arith.constant 0 : index
      %26 = vector.load %arg8[%c0_18, %c0_19] : memref<16x128xf32, #tpu.memory_space<vmem>>, vector<16x128xf32>
      %c0_20 = arith.constant 0 : index
      %c0_21 = arith.constant 0 : index
      %27 = vector.load %arg7[%c0_20, %c0_21] : memref<16x128xf32, #tpu.memory_space<vmem>>, vector<16x128xf32>
      tpu.vector_store %arg7[%c0_20, %c0_21], %26 {strides = array<i32>} : memref<16x128xf32, #tpu.memory_space<vmem>>, vector<16x128xf32>,
    } else {
    }
    return
  }
  func.func @transform_0(%arg0: i32, %arg1: i32) -> (i32, i32) {
    %c0_i32 = arith.constant 0 : i32
    %c0_i32_0 = arith.constant 0 : i32
    return %arg0, %c0_i32 : i32, i32
  }
  func.func @transform_1(%arg0: i32, %arg1: i32) -> (i32, i32) {
    %c0_i32 = arith.constant 0 : i32
    %c0_i32_0 = arith.constant 0 : i32
    return %c0_i32, %arg1 : i32, i32
  }
  func.func @transform_2(%arg0: i32, %arg1: i32) -> (i32, i32) {
    %c0_i32 = arith.constant 0 : i32
    %c0_i32_0 = arith.constant 0 : i32
    return %c0_i32, %arg1 : i32, i32
  }
  func.func @transform_3(%arg0: i32, %arg1: i32) -> (i32, i32) {
    %c0_i32 = arith.constant 0 : i32
    %c0_i32_0 = arith.constant 0 : i32
    return %arg1, %c0_i32 : i32, i32
  }
  func.func @transform_4(%arg0: i32, %arg1: i32) -> (i32, i32) {
    %c0_i32 = arith.constant 0 : i32
    %c0_i32_0 = arith.constant 0 : i32
    %c0_i32_1 = arith.constant 0 : i32
    return %c0_i32, %c0_i32_0 : i32, i32
  }
  func.func @transform_5(%arg0: i32, %arg1: i32) -> (i32, i32) {
    %c0_i32 = arith.constant 0 : i32
    %c0_i32_0 = arith.constant 0 : i32
    return %arg0, %c0_i32 : i32, i32
  }
}

module attributes {stable_mosaic.version = 11 : i64} {
  func.func @_mlp_kernel(%arg0: i32, %arg1: i32, %arg2: memref<16x128xbf16, #tpu.memory_space<vmem>>, %arg3: memref<128x128xbf16, #tpu.memory_space<vmem>>, %arg4: memref<1x128xf32, #tpu.memory_space<vmem>>, %arg5: memref<128x128xbf16, #tpu.memory_space<vmem>>, %arg6: memref<1x128xf32, #tpu.memory_space<vmem>>, %arg7: memref<16x128xf32, #tpu.memory_space<vmem>>, %arg8: memref<16x128xf32, #tpu.memory_space<vmem>>) attributes {dimension_semantics = [#tpu.dimension_semantics<parallel>, #tpu.dimension_semantics<arbitrary>], iteration_bounds = array<i64: 1, 1>, scalar_prefetch = 0 : i64, scratch_operands = 1 : i64, tpu.core_type = #tpu.core_type<tc>, window_params = [{transform_indices = @transform_0, window_bounds = array<i64: 16, 128>}, {transform_indices = @transform_1, window_bounds = array<i64: 128, 128>}, {transform_indices = @transform_2, window_bounds = array<i64: 1, 128>}, {transform_indices = @transform_3, window_bounds = array<i64: 128, 128>}, {pipeline_mode = #tpu.pipeline_mode<synchronous>, transform_indices = @transform_4, window_bounds = array<i64: 1, 128>}, {transform_indices = @transform_5, window_bounds = array<i64: 16, 128>}]} {
    %c0_i32 = arith.constant 0 : i32
    %0 = arith.cmpi eq, %arg1, %c0_i32 : i32
    %1 = arith.extui %0 : i1 to i32
    %c0_i32_0 = arith.constant 0 : i32
    %2 = arith.cmpi ne, %1, %c0_i32_0 : i32
    scf.if %2 {
      %c0_18 = arith.constant 0 : index
      %c0_19 = arith.constant 0 : index
      %26 = vector.load %arg6[%c0_18, %c0_19] : memref<1x128xf32, #tpu.memory_space<vmem>>, vector<1x128xf32>
      %27 = vector.shape_cast %26 : vector<1x128xf32> to vector<1x128xf32>
      %28 = vector.broadcast %27 : vector<1x128xf32> to vector<16x128xf32>
      %c0_20 = arith.constant 0 : index
      %c0_21 = arith.constant 0 : index
      %29 = vector.load %arg8[%c0_20, %c0_21] : memref<16x128xf32, #tpu.memory_space<vmem>>, vector<16x128xf32>
      tpu.vector_store %arg8[%c0_20, %c0_21], %28 {strides = array<i32>} : memref<16x128xf32, #tpu.memory_space<vmem>>, vector<16x128xf32>,
    } else {
    }
    %c0 = arith.constant 0 : index
    %c0_1 = arith.constant 0 : index
    %3 = vector.load %arg2[%c0, %c0_1] : memref<16x128xbf16, #tpu.memory_space<vmem>>, vector<16x128xbf16>
    %c0_2 = arith.constant 0 : index
    %c0_3 = arith.constant 0 : index
    %4 = vector.load %arg3[%c0_2, %c0_3] : memref<128x128xbf16, #tpu.memory_space<vmem>>, vector<128x128xbf16>
    %cst = arith.constant dense<0.000000e+00> : vector<16x128xf32>
    %5 = tpu.matmul %3, %4, %cst {dimension_numbers = #tpu.dot_dimension_numbers<[1], [0], [0], [1], [0, 0, 1, 1], [], []>} : vector<16x128xbf16>, vector<128x128xbf16>, vector<16x128xf32> -> vector<16x128xf32>
    %c0_4 = arith.constant 0 : index
    %c0_5 = arith.constant 0 : index
    %6 = vector.load %arg4[%c0_4, %c0_5] : memref<1x128xf32, #tpu.memory_space<vmem>>, vector<1x128xf32>
    %7 = vector.broadcast %6 : vector<1x128xf32> to vector<16x128xf32>
    %8 = arith.addf %5, %7 : vector<16x128xf32>
    %cst_6 = arith.constant 5.000000e-01 : f32
    %9 = vector.broadcast %cst_6 : f32 to vector<16x128xf32>
    %10 = arith.mulf %9, %8 : vector<16x128xf32>
    %cst_7 = arith.constant 0.707106769 : f32
    %11 = vector.broadcast %cst_7 : f32 to vector<16x128xf32>
    %12 = arith.mulf %8, %11 : vector<16x128xf32>
    %13 = math.erf %12 : vector<16x128xf32>
    %cst_8 = arith.constant 1.000000e+00 : f32
    %14 = vector.broadcast %cst_8 : f32 to vector<16x128xf32>
    %15 = arith.addf %14, %13 : vector<16x128xf32>
    %16 = arith.mulf %10, %15 : vector<16x128xf32>
    %c0_9 = arith.constant 0 : index
    %c0_10 = arith.constant 0 : index
    %17 = vector.load %arg8[%c0_9, %c0_10] : memref<16x128xf32, #tpu.memory_space<vmem>>, vector<16x128xf32>
    %18 = arith.truncf %16 : vector<16x128xf32> to vector<16x128xbf16>
    %c0_11 = arith.constant 0 : index
    %c0_12 = arith.constant 0 : index
    %19 = vector.load %arg5[%c0_11, %c0_12] : memref<128x128xbf16, #tpu.memory_space<vmem>>, vector<128x128xbf16>
    %cst_13 = arith.constant dense<0.000000e+00> : vector<16x128xf32>
    %20 = tpu.matmul %18, %19, %cst_13 {dimension_numbers = #tpu.dot_dimension_numbers<[1], [0], [0], [1], [0, 0, 1, 1], [], []>} : vector<16x128xbf16>, vector<128x128xbf16>, vector<16x128xf32> -> vector<16x128xf32>
    %21 = arith.addf %17, %20 : vector<16x128xf32>
    %c0_14 = arith.constant 0 : index
    %c0_15 = arith.constant 0 : index
    %22 = vector.load %arg8[%c0_14, %c0_15] : memref<16x128xf32, #tpu.memory_space<vmem>>, vector<16x128xf32>
    tpu.vector_store %arg8[%c0_14, %c0_15], %21 {strides = array<i32>} : memref<16x128xf32, #tpu.memory_space<vmem>>, vector<16x128xf32>,
    %c0_i32_16 = arith.constant 0 : i32
    %23 = arith.cmpi eq, %arg1, %c0_i32_16 : i32
    %24 = arith.extui %23 : i1 to i32
    %c0_i32_17 = arith.constant 0 : i32
    %25 = arith.cmpi ne, %24, %c0_i32_17 : i32
    scf.if %25 {
      %c0_18 = arith.constant 0 : index
      %c0_19 = arith.constant 0 : index
      %26 = vector.load %arg8[%c0_18, %c0_19] : memref<16x128xf32, #tpu.memory_space<vmem>>, vector<16x128xf32>
      %c0_20 = arith.constant 0 : index
      %c0_21 = arith.constant 0 : index
      %27 = vector.load %arg7[%c0_20, %c0_21] : memref<16x128xf32, #tpu.memory_space<vmem>>, vector<16x128xf32>
      tpu.vector_store %arg7[%c0_20, %c0_21], %26 {strides = array<i32>} : memref<16x128xf32, #tpu.memory_space<vmem>>, vector<16x128xf32>,
    } else {
    }
    return
  }
  func.func @transform_0(%arg0: i32, %arg1: i32) -> (i32, i32) {
    %c0_i32 = arith.constant 0 : i32
    %c0_i32_0 = arith.constant 0 : i32
    return %arg0, %c0_i32 : i32, i32
  }
  func.func @transform_1(%arg0: i32, %arg1: i32) -> (i32, i32) {
    %c0_i32 = arith.constant 0 : i32
    %c0_i32_0 = arith.constant 0 : i32
    return %c0_i32, %arg1 : i32, i32
  }
  func.func @transform_2(%arg0: i32, %arg1: i32) -> (i32, i32) {
    %c0_i32 = arith.constant 0 : i32
    %c0_i32_0 = arith.constant 0 : i32
    return %c0_i32, %arg1 : i32, i32
  }
  func.func @transform_3(%arg0: i32, %arg1: i32) -> (i32, i32) {
    %c0_i32 = arith.constant 0 : i32
    %c0_i32_0 = arith.constant 0 : i32
    return %arg1, %c0_i32 : i32, i32
  }
  func.func @transform_4(%arg0: i32, %arg1: i32) -> (i32, i32) {
    %c0_i32 = arith.constant 0 : i32
    %c0_i32_0 = arith.constant 0 : i32
    %c0_i32_1 = arith.constant 0 : i32
    return %c0_i32, %c0_i32_0 : i32, i32
  }
  func.func @transform_5(%arg0: i32, %arg1: i32) -> (i32, i32) {
    %c0_i32 = arith.constant 0 : i32
    %c0_i32_0 = arith.constant 0 : i32
    return %arg0, %c0_i32 : i32, i32
  }
}

</mosaic_0001>

<llo_original>
// kernel: tpu_custom_call.1
$region0: #{tpu_custom_call.1}
  #allocation0 [shape = 'u32[]', space=smem, size = 0x4, offset = 0x4, fixed_abs, tag = 'smem constant byte address 0x4 - core index']
  #allocation1 [shape = 'u32[72,128]{1,0:T(1,128)}', space=vmem, size = 0x9000, scoped, tag = 'internal scratch']
  #allocation2 [shape = 'f32[16,128]{1,0:T(8,128)}', space=vmem, size = 0x2000, scoped, tag = 'scratch operand']
  %s0 = inlined_call_operand.hbm [shape: bf16[16,128], index: 0, kind: input, shape index: {}]
  %s1 = inlined_call_operand.hbm [shape: bf16[128,128], index: 1, kind: input, shape index: {}]
  %s2 = inlined_call_operand.vmem [shape: f32[1,128], index: 2, kind: input, shape index: {}]
  %s3 = inlined_call_operand.hbm [shape: bf16[128,128], index: 3, kind: input, shape index: {}]
  %s4 = inlined_call_operand.vmem [shape: f32[1,128], index: 4, kind: input, shape index: {}]
  %s5 = inlined_call_operand.hbm [shape: f32[16,128], index: 5, kind: output, shape index: {}]
  %s6 = sld [smem:[#allocation0]]
  $region50: #{tpu_custom_call.1} parent=0
    _
  %s8 = ssub.s32 1, %s6
  %s9 = scalar_select 0, %s8, %s6
  $region1: #{tpu_custom_call.1} parent=0
    #allocation3 [shape = 'u8[4096]{0}', space=vmem, size = 0x1000, scoped, tag = 'input window, operand 0, single buffered']
    #allocation4 [shape = 's32[1]{0}', space=sflag, size = 0x4, scoped, tag = 'scoped memory for tpu_custom_call.1']
    #allocation5 [shape = 's32[1]{0}', space=sflag, size = 0x4, scoped, tag = 'scoped memory for tpu_custom_call.1']
    #allocation6 [shape = 'u8[32768]{0}', space=vmem, size = 0x8000, scoped, tag = 'input window, operand 1, single buffered']
    #allocation7 [shape = 's32[1]{0}', space=sflag, size = 0x4, scoped, tag = 'scoped memory for tpu_custom_call.1']
    #allocation8 [shape = 'u8[32768]{0}', space=vmem, size = 0x8000, scoped, tag = 'input window, operand 3, single buffered']
    #allocation9 [shape = 'u8[8192]{0}', space=vmem, size = 0x2000, scoped, tag = 'output window, operand 0, single buffered']
    %10 = vsyncpa [#allocation4], 0
    %11 = vsyncpa [#allocation7], 0
    %12 = vsyncpa [#allocation5], 0
    // Predicated region
    $region2: #{tpu_custom_call.1} parent=1 // pred_check
      _
    $region3: #{tpu_custom_call.1} parent=1 // pred_check_branch
      %14 = sbr.rel (0) target = $region5
    $region4: #{tpu_custom_call.1} parent=1 // pred_region
      %16 = vsyncadd [#allocation4], 0
      %s17 = sshll.u32 %s0, 4
      %s18 = int_to_ptr.hbm [resolvable:$true] %s17
      %s19 = sshll.u32 [#allocation3], 4
      %s20 = int_to_ptr.vmem [resolvable:$true] %s19
      %25 = dma.hbm_to_vmem [thread:$0]  %s18, 128, %s20, [#allocation4], 64, 64, 4
    $region5: #{tpu_custom_call.1} parent=1 // pred_fallthru
      _
    // Predicated region
    $region6: #{tpu_custom_call.1} parent=1 // pred_check
      _
    $region7: #{tpu_custom_call.1} parent=1 // pred_check_branch
      %27 = sbr.rel (0) target = $region9
    $region8: #{tpu_custom_call.1} parent=1 // pred_region
      %29 = vsyncadd [#allocation7], 0
      %s30 = sshll.u32 %s1, 4
      %s31 = int_to_ptr.hbm [resolvable:$true] %s30
      %s32 = sshll.u32 [#allocation6], 4
      %s33 = int_to_ptr.vmem [resolvable:$true] %s32
      %38 = dma.hbm_to_vmem [thread:$0]  %s31, 1024, %s33, [#allocation7], 64, 64, 4
    $region9: #{tpu_custom_call.1} parent=1 // pred_fallthru
      _
    // Predicated region
    $region10: #{tpu_custom_call.1} parent=1 // pred_check
      _
    $region11: #{tpu_custom_call.1} parent=1 // pred_check_branch
      %40 = sbr.rel (0) target = $region13
    $region12: #{tpu_custom_call.1} parent=1 // pred_region
      _
    $region13: #{tpu_custom_call.1} parent=1 // pred_fallthru
      _
    // Predicated region
    $region14: #{tpu_custom_call.1} parent=1 // pred_check
      _
    $region15: #{tpu_custom_call.1} parent=1 // pred_check_branch
      %42 = sbr.rel (0) target = $region17
    $region16: #{tpu_custom_call.1} parent=1 // pred_region
      %44 = vsyncadd [#allocation7], 0
      %s45 = sshll.u32 %s3, 4
      %s46 = int_to_ptr.hbm [resolvable:$true] %s45
      %s47 = sshll.u32 [#allocation8], 4
      %s48 = int_to_ptr.vmem [resolvable:$true] %s47
      %53 = dma.hbm_to_vmem [thread:$0]  %s46, 1024, %s48, [#allocation7], 64, 64, 4
    $region17: #{tpu_custom_call.1} parent=1 // pred_fallthru
      _
    // Predicated region
    $region18: #{tpu_custom_call.1} parent=1 // pred_check
      _
    $region19: #{tpu_custom_call.1} parent=1 // pred_check_branch
      %55 = sbr.rel (0) target = $region21
    $region20: #{tpu_custom_call.1} parent=1 // pred_region
      _
    $region21: #{tpu_custom_call.1} parent=1 // pred_fallthru
      _
    // Predicated region
    $region22: #{tpu_custom_call.1} parent=1 // pred_check
      _
    $region23: #{tpu_custom_call.1} parent=1 // pred_check_branch
      %57 = sbr.rel (0) target = $region25
    $region24: #{tpu_custom_call.1} parent=1 // pred_region
      %59 = dma.done [#allocation4], 128
    $region25: #{tpu_custom_call.1} parent=1 // pred_fallthru
      _
    // Predicated region
    $region26: #{tpu_custom_call.1} parent=1 // pred_check
      _
    $region27: #{tpu_custom_call.1} parent=1 // pred_check_branch
      %61 = sbr.rel (0) target = $region29
    $region28: #{tpu_custom_call.1} parent=1 // pred_region
      %63 = dma.done [#allocation7], 1024
    $region29: #{tpu_custom_call.1} parent=1 // pred_fallthru
      _
    // Predicated region
    $region30: #{tpu_custom_call.1} parent=1 // pred_check
      _
    $region31: #{tpu_custom_call.1} parent=1 // pred_check_branch
      %65 = sbr.rel (0) target = $region33
    $region32: #{tpu_custom_call.1} parent=1 // pred_region
      %67 = dma.done [#allocation7], 1024
    $region33: #{tpu_custom_call.1} parent=1 // pred_fallthru
      _
    %p68 = scmp.eq.s32.totalorder 0, 0
    // Predicated region
    $region34: #{tpu_custom_call.1} parent=1 // pred_check
      %p69 = pneg %p68
    $region35: #{tpu_custom_call.1} parent=1 // pred_check_branch
      %71 = sbr.rel (%p69) target = $region37
    $region36: #{tpu_custom_call.1} parent=1 // pred_region
      %v72 = vld [vmem:[%s4] sm:$0x1]
      %v74 = vperm.slane %v72, 0
      %76 = vst [vmem:[#allocation2] sm:$0xff] %v74
      %77 = vst [vmem:[#allocation2 + $0x8] sm:$0xff] %v74
    $region37: #{tpu_custom_call.1} parent=1 // pred_fallthru
      _
    %v78 = vld [vmem:[#allocation3] sm:$0xf]
    %v79 = vld [vmem:[#allocation3 + $0x4] sm:$0xf]
    %v80 = vld [vmem:[#allocation6] sm:$0xf]
    %v81 = vld [vmem:[#allocation6 + $0x4] sm:$0xf]
    %v82 = vld [vmem:[#allocation6 + $0x8] sm:$0xf]
    %v83 = vld [vmem:[#allocation6 + $0xc] sm:$0xf]
    %v84 = vld [vmem:[#allocation6 + $0x10] sm:$0xf]
    %v85 = vld [vmem:[#allocation6 + $0x14] sm:$0xf]
    %v86 = vld [vmem:[#allocation6 + $0x18] sm:$0xf]
    %v87 = vld [vmem:[#allocation6 + $0x1c] sm:$0xf]
    %v88 = vld [vmem:[#allocation6 + $0x20] sm:$0xf]
    %v89 = vld [vmem:[#allocation6 + $0x24] sm:$0xf]
    %v90 = vld [vmem:[#allocation6 + $0x28] sm:$0xf]
    %v91 = vld [vmem:[#allocation6 + $0x2c] sm:$0xf]
    %v92 = vld [vmem:[#allocation6 + $0x30] sm:$0xf]
    %v93 = vld [vmem:[#allocation6 + $0x34] sm:$0xf]
    %v94 = vld [vmem:[#allocation6 + $0x38] sm:$0xf]
    %v95 = vld [vmem:[#allocation6 + $0x3c] sm:$0xf]
    %v96 = vld [vmem:[%s2] sm:$0x1]
    %v98 = vperm.slane %v96, 0
    %v102 = vunpack.c.l.b16 %v78
    %v103 = vunpack.c.l.b16 %v79
    %v104 = vpack.c.b16 %v103, %v102
    %v122 = vunpack.c.l.b16 %v80
    %v123 = vunpack.c.l.b16 %v81
    %v124 = vunpack.c.l.b16 %v82
    %v125 = vunpack.c.l.b16 %v83
    %v126 = vunpack.c.l.b16 %v84
    %v127 = vunpack.c.l.b16 %v85
    %v128 = vunpack.c.l.b16 %v86
    %v129 = vunpack.c.l.b16 %v87
    %v130 = vunpack.c.l.b16 %v88
    %v131 = vunpack.c.l.b16 %v89
    %v132 = vunpack.c.l.b16 %v90
    %v133 = vunpack.c.l.b16 %v91
    %v134 = vunpack.c.l.b16 %v92
    %v135 = vunpack.c.l.b16 %v93
    %v136 = vunpack.c.l.b16 %v94
    %v137 = vunpack.c.l.b16 %v95
    %v138 = vpack.c.b16 %v123, %v122
    %v139 = vpack.c.b16 %v125, %v124
    %v140 = vpack.c.b16 %v127, %v126
    %v141 = vpack.c.b16 %v129, %v128
    %v142 = vpack.c.b16 %v131, %v130
    %v143 = vpack.c.b16 %v133, %v132
    %v144 = vpack.c.b16 %v135, %v134
    %v145 = vpack.c.b16 %v137, %v136
    %154 = vmatpush.bf16.msra.mxu0 %v145
    %155 = vmatpush.bf16.msra.mxu0 %v144
    %156 = vmatpush.bf16.msra.mxu0 %v143
    %157 = vmatpush.bf16.msra.mxu0 %v142
    %158 = vmatpush.bf16.msra.mxu0 %v141
    %159 = vmatpush.bf16.msra.mxu0 %v140
    %160 = vmatpush.bf16.msra.mxu0 %v139
    %161 = vmatpush.bf16.msra.mxu0 %v138
    %162 = vmatmul.bf16.gmra.mxu0 %v104
    %v163 = vpop.f32.mrf.mxu0
    %v164 = vadd.f32 %v98, %v163
    %v165 = vpop.f32.mrf.mxu0
    %v166 = vadd.f32 %v98, %v165
    %167 = vdwg.mxu0
    %v168 = vmul.f32 %v164, 0.5
    %v169 = vmul.f32 %v166, 0.5
    %v170 = vmul.f32 %v164, 0.70710677
    %v171 = vmul.f32 %v166, 0.70710677
    %v172 = vmul.f32 %v170, %v170
    %v173 = vmin.f32 16.0, %v172
    %v174 = vmul.f32 %v173, 2.1237322e-06
    %v175 = vadd.f32 %v174, 0.00028619796
    %v176 = vmul.f32 %v173, %v175
    %v177 = vadd.f32 %v176, 0.0036580483
    %v178 = vmul.f32 %v173, %v177
    %v179 = vadd.f32 %v178, 0.05243302
    %v180 = vmul.f32 %v173, %v179
    %v181 = vadd.f32 %v180, 0.18741608
    %v182 = vmul.f32 %v173, %v181
    %v183 = vadd.f32 %v182, 1.1283791
    %v184 = vmul.f32 %v170, %v183
    %v185 = vmul.f32 %v173, 3.8918573e-05
    %v186 = vadd.f32 %v185, 0.001143296
    %v187 = vmul.f32 %v173, %v186
    %v188 = vadd.f32 %v187, 0.014752088
    %v189 = vmul.f32 %v173, %v188
    %v190 = vadd.f32 %v189, 0.112945676
    %v191 = vmul.f32 %v173, %v190
    %v192 = vadd.f32 %v191, 0.4994258
    %v193 = vmul.f32 %v173, %v192
    %v194 = vadd.f32 %v193, 1.0
    %v195 = vrcp.pop %v194
    %v196 = vmul.f32 %v194, %v195
    %v197 = vsub.f32 1.0, %v196
    %v198 = vmul.f32 %v195, %v197
    %v199 = vadd.f32 %v195, %v198
    %vm200 = vweird.f32 %v194
    %vm201 = vweird.f32 %v195
    %vm202 = vmor %vm200, %vm201
    %v203 = vsel %vm202, %v195, %v199
    %v204 = vand.u32 2147483647, %v194
    %vm205 = vcmp.eq.f32.partialorder %v204, 8.507059e+37
    %v206 = vand.u32 %v194, 2147483648
    %v207 = vor.u32 1.1754944e-38, %v206
    %v208 = vsel %vm205, %v207, %v203
    %v209 = vmul.f32 %v184, %v208
    %v210 = vmin.f32 %v209, 1.0
    %v211 = vmax.f32 %v210, -1.0
    %v212 = vmul.f32 %v171, %v171
    %v213 = vmin.f32 16.0, %v212
    %v214 = vmul.f32 %v213, 2.1237322e-06
    %v215 = vadd.f32 %v214, 0.00028619796
    %v216 = vmul.f32 %v213, %v215
    %v217 = vadd.f32 %v216, 0.0036580483
    %v218 = vmul.f32 %v213, %v217
    %v219 = vadd.f32 %v218, 0.05243302
    %v220 = vmul.f32 %v213, %v219
    %v221 = vadd.f32 %v220, 0.18741608
    %v222 = vmul.f32 %v213, %v221
    %v223 = vadd.f32 %v222, 1.1283791
    %v224 = vmul.f32 %v171, %v223
    %v225 = vmul.f32 %v213, 3.8918573e-05
    %v226 = vadd.f32 %v225, 0.001143296
    %v227 = vmul.f32 %v213, %v226
    %v228 = vadd.f32 %v227, 0.014752088
    %v229 = vmul.f32 %v213, %v228
    %v230 = vadd.f32 %v229, 0.112945676
    %v231 = vmul.f32 %v213, %v230
    %v232 = vadd.f32 %v231, 0.4994258
    %v233 = vmul.f32 %v213, %v232
    %v234 = vadd.f32 %v233, 1.0
    %v235 = vrcp.pop %v234
    %v236 = vmul.f32 %v234, %v235
    %v237 = vsub.f32 1.0, %v236
    %v238 = vmul.f32 %v235, %v237
    %v239 = vadd.f32 %v235, %v238
    %vm240 = vweird.f32 %v234
    %vm241 = vweird.f32 %v235
    %vm242 = vmor %vm240, %vm241
    %v243 = vsel %vm242, %v235, %v239
    %v244 = vand.u32 2147483647, %v234
    %vm245 = vcmp.eq.f32.partialorder %v244, 8.507059e+37
    %v246 = vand.u32 %v234, 2147483648
    %v247 = vor.u32 1.1754944e-38, %v246
    %v248 = vsel %vm245, %v247, %v243
    %v249 = vmul.f32 %v224, %v248
    %v250 = vmin.f32 %v249, 1.0
    %v251 = vmax.f32 %v250, -1.0
    %v252 = vadd.f32 %v211, 1.0
    %v253 = vadd.f32 %v251, 1.0
    %v254 = vmul.f32 %v168, %v252
    %v255 = vmul.f32 %v169, %v253
    %v256 = vld [vmem:[#allocation2] sm:$0xff]
    %v257 = vld [vmem:[#allocation2 + $0x8] sm:$0xff]
    %v258 = vpack.c.bf16 %v255, %v254
    %v259 = vld [vmem:[#allocation8] sm:$0xf]
    %v260 = vld [vmem:[#allocation8 + $0x4] sm:$0xf]
    %v261 = vld [vmem:[#allocation8 + $0x8] sm:$0xf]
    %v262 = vld [vmem:[#allocation8 + $0xc] sm:$0xf]
    %v263 = vld [vmem:[#allocation8 + $0x10] sm:$0xf]
    %v264 = vld [vmem:[#allocation8 + $0x14] sm:$0xf]
    %v265 = vld [vmem:[#allocation8 + $0x18] sm:$0xf]
    %v266 = vld [vmem:[#allocation8 + $0x1c] sm:$0xf]
    %v267 = vld [vmem:[#allocation8 + $0x20] sm:$0xf]
    %v268 = vld [vmem:[#allocation8 + $0x24] sm:$0xf]
    %v269 = vld [vmem:[#allocation8 + $0x28] sm:$0xf]
    %v270 = vld [vmem:[#allocation8 + $0x2c] sm:$0xf]
    %v271 = vld [vmem:[#allocation8 + $0x30] sm:$0xf]
    %v272 = vld [vmem:[#allocation8 + $0x34] sm:$0xf]
    %v273 = vld [vmem:[#allocation8 + $0x38] sm:$0xf]
    %v274 = vld [vmem:[#allocation8 + $0x3c] sm:$0xf]
    %v291 = vunpack.c.l.b16 %v259
    %v292 = vunpack.c.l.b16 %v260
    %v293 = vunpack.c.l.b16 %v261
    %v294 = vunpack.c.l.b16 %v262
    %v295 = vunpack.c.l.b16 %v263
    %v296 = vunpack.c.l.b16 %v264
    %v297 = vunpack.c.l.b16 %v265
    %v298 = vunpack.c.l.b16 %v266
    %v299 = vunpack.c.l.b16 %v267
    %v300 = vunpack.c.l.b16 %v268
    %v301 = vunpack.c.l.b16 %v269
    %v302 = vunpack.c.l.b16 %v270
    %v303 = vunpack.c.l.b16 %v271
    %v304 = vunpack.c.l.b16 %v272
    %v305 = vunpack.c.l.b16 %v273
    %v306 = vunpack.c.l.b16 %v274
    %v307 = vpack.c.b16 %v292, %v291
    %v308 = vpack.c.b16 %v294, %v293
    %v309 = vpack.c.b16 %v296, %v295
    %v310 = vpack.c.b16 %v298, %v297
    %v311 = vpack.c.b16 %v300, %v299
    %v312 = vpack.c.b16 %v302, %v301
    %v313 = vpack.c.b16 %v304, %v303
    %v314 = vpack.c.b16 %v306, %v305
    %323 = vmatpush.bf16.msra.mxu0 %v314
    %324 = vmatpush.bf16.msra.mxu0 %v313
    %325 = vmatpush.bf16.msra.mxu0 %v312
    %326 = vmatpush.bf16.msra.mxu0 %v311
    %327 = vmatpush.bf16.msra.mxu0 %v310
    %328 = vmatpush.bf16.msra.mxu0 %v309
    %329 = vmatpush.bf16.msra.mxu0 %v308
    %330 = vmatpush.bf16.msra.mxu0 %v307
    %331 = vmatmul.bf16.gmra.mxu0 %v258
    %v332 = vpop.f32.mrf.mxu0
    %v333 = vadd.f32 0.0, %v332
    %v334 = vpop.f32.mrf.mxu0
    %v335 = vadd.f32 0.0, %v334
    %336 = vdwg.mxu0
    %v337 = vadd.f32 %v256, %v333
    %v338 = vadd.f32 %v257, %v335
    %339 = vst [vmem:[#allocation2] sm:$0xff] %v337
    %340 = vst [vmem:[#allocation2 + $0x8] sm:$0xff] %v338
    // Predicated region
    $region38: #{tpu_custom_call.1} parent=1 // pred_check
      %p341 = pneg %p68
    $region39: #{tpu_custom_call.1} parent=1 // pred_check_branch
      %343 = sbr.rel (%p341) target = $region41
    $region40: #{tpu_custom_call.1} parent=1 // pred_region
      %v344 = vld [vmem:[#allocation2] sm:$0xff]
      %v345 = vld [vmem:[#allocation2 + $0x8] sm:$0xff]
      %346 = vst [vmem:[#allocation9] sm:$0xff] %v344
      %347 = vst [vmem:[#allocation9 + $0x8] sm:$0xff] %v345
    $region41: #{tpu_custom_call.1} parent=1 // pred_fallthru
      _
    // Predicated region
    $region42: #{tpu_custom_call.1} parent=1 // pred_check
      _
    $region43: #{tpu_custom_call.1} parent=1 // pred_check_branch
      %349 = sbr.rel (0) target = $region45
    $region44: #{tpu_custom_call.1} parent=1 // pred_region
      %351 = vsyncadd [#allocation5], 0
      %s352 = sshll.u32 [#allocation9], 4
      %s353 = int_to_ptr.vmem [resolvable:$true] %s352
      %s354 = sshll.u32 %s5, 4
      %s355 = int_to_ptr.hbm [resolvable:$true] %s354
      %360 = dma.vmem_to_hbm [thread:$0]  %s353, 256, %s355, [#allocation5], 128, 128, 8
    $region45: #{tpu_custom_call.1} parent=1 // pred_fallthru
      _
    // Predicated region
    $region46: #{tpu_custom_call.1} parent=1 // pred_check
      _
    $region47: #{tpu_custom_call.1} parent=1 // pred_check_branch
      %362 = sbr.rel (0) target = $region49
    $region48: #{tpu_custom_call.1} parent=1 // pred_region
      %364 = dma.done [#allocation5], 256
    $region49: #{tpu_custom_call.1} parent=1 // pred_fallthru
      _
    %365 = vsyncpa [#allocation4], 1
    %366 = vsyncpa [#allocation7], 1
    %367 = vsyncpa [#allocation5], 1

// kernel: tpu_custom_call.1
$region0: #{tpu_custom_call.1}
  #allocation0 [shape = 'u32[]', space=smem, size = 0x4, offset = 0x4, fixed_abs, tag = 'smem constant byte address 0x4 - core index']
  #allocation1 [shape = 'u32[72,128]{1,0:T(1,128)}', space=vmem, size = 0x9000, scoped, tag = 'internal scratch']
  #allocation2 [shape = 'f32[16,128]{1,0:T(8,128)}', space=vmem, size = 0x2000, scoped, tag = 'scratch operand']
  %s0 = inlined_call_operand.hbm [shape: bf16[16,128], index: 0, kind: input, shape index: {}]
  %s1 = inlined_call_operand.hbm [shape: bf16[128,128], index: 1, kind: input, shape index: {}]
  %s2 = inlined_call_operand.vmem [shape: f32[1,128], index: 2, kind: input, shape index: {}]
  %s3 = inlined_call_operand.hbm [shape: bf16[128,128], index: 3, kind: input, shape index: {}]
  %s4 = inlined_call_operand.vmem [shape: f32[1,128], index: 4, kind: input, shape index: {}]
  %s5 = inlined_call_operand.hbm [shape: f32[16,128], index: 5, kind: output, shape index: {}]
  %s6 = sld [smem:[#allocation0]]
  $region50: #{tpu_custom_call.1} parent=0
    _
  %s8 = ssub.s32 1, %s6
  %s9 = scalar_select 0, %s8, %s6
  $region1: #{tpu_custom_call.1} parent=0
    #allocation3 [shape = 'u8[4096]{0}', space=vmem, size = 0x1000, scoped, tag = 'input window, operand 0, single buffered']
    #allocation4 [shape = 's32[1]{0}', space=sflag, size = 0x4, scoped, tag = 'scoped memory for tpu_custom_call.1']
    #allocation5 [shape = 's32[1]{0}', space=sflag, size = 0x4, scoped, tag = 'scoped memory for tpu_custom_call.1']
    #allocation6 [shape = 'u8[32768]{0}', space=vmem, size = 0x8000, scoped, tag = 'input window, operand 1, single buffered']
    #allocation7 [shape = 's32[1]{0}', space=sflag, size = 0x4, scoped, tag = 'scoped memory for tpu_custom_call.1']
    #allocation8 [shape = 'u8[32768]{0}', space=vmem, size = 0x8000, scoped, tag = 'input window, operand 3, single buffered']
    #allocation9 [shape = 'u8[8192]{0}', space=vmem, size = 0x2000, scoped, tag = 'output window, operand 0, single buffered']
    %10 = vsyncpa [#allocation4], 0
    %11 = vsyncpa [#allocation7], 0
    %12 = vsyncpa [#allocation5], 0
    // Predicated region
    $region2: #{tpu_custom_call.1} parent=1 // pred_check
      _
    $region3: #{tpu_custom_call.1} parent=1 // pred_check_branch
      %14 = sbr.rel (0) target = $region5
    $region4: #{tpu_custom_call.1} parent=1 // pred_region
      %16 = vsyncadd [#allocation4], 0
      %s17 = sshll.u32 %s0, 4
      %s18 = int_to_ptr.hbm [resolvable:$true] %s17
      %s19 = sshll.u32 [#allocation3], 4
      %s20 = int_to_ptr.vmem [resolvable:$true] %s19
      %25 = dma.hbm_to_vmem [thread:$0]  %s18, 128, %s20, [#allocation4], 64, 64, 4
    $region5: #{tpu_custom_call.1} parent=1 // pred_fallthru
      _
    // Predicated region
    $region6: #{tpu_custom_call.1} parent=1 // pred_check
      _
    $region7: #{tpu_custom_call.1} parent=1 // pred_check_branch
      %27 = sbr.rel (0) target = $region9
    $region8: #{tpu_custom_call.1} parent=1 // pred_region
      %29 = vsyncadd [#allocation7], 0
      %s30 = sshll.u32 %s1, 4
      %s31 = int_to_ptr.hbm [resolvable:$true] %s30
      %s32 = sshll.u32 [#allocation6], 4
      %s33 = int_to_ptr.vmem [resolvable:$true] %s32
      %38 = dma.hbm_to_vmem [thread:$0]  %s31, 1024, %s33, [#allocation7], 64, 64, 4
    $region9: #{tpu_custom_call.1} parent=1 // pred_fallthru
      _
    // Predicated region
    $region10: #{tpu_custom_call.1} parent=1 // pred_check
      _
    $region11: #{tpu_custom_call.1} parent=1 // pred_check_branch
      %40 = sbr.rel (0) target = $region13
    $region12: #{tpu_custom_call.1} parent=1 // pred_region
      _
    $region13: #{tpu_custom_call.1} parent=1 // pred_fallthru
      _
    // Predicated region
    $region14: #{tpu_custom_call.1} parent=1 // pred_check
      _
    $region15: #{tpu_custom_call.1} parent=1 // pred_check_branch
      %42 = sbr.rel (0) target = $region17
    $region16: #{tpu_custom_call.1} parent=1 // pred_region
      %44 = vsyncadd [#allocation7], 0
      %s45 = sshll.u32 %s3, 4
      %s46 = int_to_ptr.hbm [resolvable:$true] %s45
      %s47 = sshll.u32 [#allocation8], 4
      %s48 = int_to_ptr.vmem [resolvable:$true] %s47
      %53 = dma.hbm_to_vmem [thread:$0]  %s46, 1024, %s48, [#allocation7], 64, 64, 4
    $region17: #{tpu_custom_call.1} parent=1 // pred_fallthru
      _
    // Predicated region
    $region18: #{tpu_custom_call.1} parent=1 // pred_check
      _
    $region19: #{tpu_custom_call.1} parent=1 // pred_check_branch
      %55 = sbr.rel (0) target = $region21
    $region20: #{tpu_custom_call.1} parent=1 // pred_region
      _
    $region21: #{tpu_custom_call.1} parent=1 // pred_fallthru
      _
    // Predicated region
    $region22: #{tpu_custom_call.1} parent=1 // pred_check
      _
    $region23: #{tpu_custom_call.1} parent=1 // pred_check_branch
      %57 = sbr.rel (0) target = $region25
    $region24: #{tpu_custom_call.1} parent=1 // pred_region
      %59 = dma.done [#allocation4], 128
    $region25: #{tpu_custom_call.1} parent=1 // pred_fallthru
      _
    // Predicated region
    $region26: #{tpu_custom_call.1} parent=1 // pred_check
      _
    $region27: #{tpu_custom_call.1} parent=1 // pred_check_branch
      %61 = sbr.rel (0) target = $region29
    $region28: #{tpu_custom_call.1} parent=1 // pred_region
      %63 = dma.done [#allocation7], 1024
    $region29: #{tpu_custom_call.1} parent=1 // pred_fallthru
      _
    // Predicated region
    $region30: #{tpu_custom_call.1} parent=1 // pred_check
      _
    $region31: #{tpu_custom_call.1} parent=1 // pred_check_branch
      %65 = sbr.rel (0) target = $region33
    $region32: #{tpu_custom_call.1} parent=1 // pred_region
      %67 = dma.done [#allocation7], 1024
    $region33: #{tpu_custom_call.1} parent=1 // pred_fallthru
      _
    %p68 = scmp.eq.s32.totalorder 0, 0
    // Predicated region
    $region34: #{tpu_custom_call.1} parent=1 // pred_check
      %p69 = pneg %p68
    $region35: #{tpu_custom_call.1} parent=1 // pred_check_branch
      %71 = sbr.rel (%p69) target = $region37
    $region36: #{tpu_custom_call.1} parent=1 // pred_region
      %v72 = vld [vmem:[%s4] sm:$0x1]
      %v74 = vperm.slane %v72, 0
      %76 = vst [vmem:[#allocation2] sm:$0xff] %v74
      %77 = vst [vmem:[#allocation2 + $0x8] sm:$0xff] %v74
    $region37: #{tpu_custom_call.1} parent=1 // pred_fallthru
      _
    %v78 = vld [vmem:[#allocation3] sm:$0xf]
    %v79 = vld [vmem:[#allocation3 + $0x4] sm:$0xf]
    %v80 = vld [vmem:[#allocation6] sm:$0xf]
    %v81 = vld [vmem:[#allocation6 + $0x4] sm:$0xf]
    %v82 = vld [vmem:[#allocation6 + $0x8] sm:$0xf]
    %v83 = vld [vmem:[#allocation6 + $0xc] sm:$0xf]
    %v84 = vld [vmem:[#allocation6 + $0x10] sm:$0xf]
    %v85 = vld [vmem:[#allocation6 + $0x14] sm:$0xf]
    %v86 = vld [vmem:[#allocation6 + $0x18] sm:$0xf]
    %v87 = vld [vmem:[#allocation6 + $0x1c] sm:$0xf]
    %v88 = vld [vmem:[#allocation6 + $0x20] sm:$0xf]
    %v89 = vld [vmem:[#allocation6 + $0x24] sm:$0xf]
    %v90 = vld [vmem:[#allocation6 + $0x28] sm:$0xf]
    %v91 = vld [vmem:[#allocation6 + $0x2c] sm:$0xf]
    %v92 = vld [vmem:[#allocation6 + $0x30] sm:$0xf]
    %v93 = vld [vmem:[#allocation6 + $0x34] sm:$0xf]
    %v94 = vld [vmem:[#allocation6 + $0x38] sm:$0xf]
    %v95 = vld [vmem:[#allocation6 + $0x3c] sm:$0xf]
    %v96 = vld [vmem:[%s2] sm:$0x1]
    %v98 = vperm.slane %v96, 0
    %v102 = vunpack.c.l.b16 %v78
    %v103 = vunpack.c.l.b16 %v79
    %v104 = vpack.c.b16 %v103, %v102
    %v122 = vunpack.c.l.b16 %v80
    %v123 = vunpack.c.l.b16 %v81
    %v124 = vunpack.c.l.b16 %v82
    %v125 = vunpack.c.l.b16 %v83
    %v126 = vunpack.c.l.b16 %v84
    %v127 = vunpack.c.l.b16 %v85
    %v128 = vunpack.c.l.b16 %v86
    %v129 = vunpack.c.l.b16 %v87
    %v130 = vunpack.c.l.b16 %v88
    %v131 = vunpack.c.l.b16 %v89
    %v132 = vunpack.c.l.b16 %v90
    %v133 = vunpack.c.l.b16 %v91
    %v134 = vunpack.c.l.b16 %v92
    %v135 = vunpack.c.l.b16 %v93
    %v136 = vunpack.c.l.b16 %v94
    %v137 = vunpack.c.l.b16 %v95
    %v138 = vpack.c.b16 %v123, %v122
    %v139 = vpack.c.b16 %v125, %v124
    %v140 = vpack.c.b16 %v127, %v126
    %v141 = vpack.c.b16 %v129, %v128
    %v142 = vpack.c.b16 %v131, %v130
    %v143 = vpack.c.b16 %v133, %v132
    %v144 = vpack.c.b16 %v135, %v134
    %v145 = vpack.c.b16 %v137, %v136
    %154 = vmatpush.bf16.msra.mxu0 %v145
    %155 = vmatpush.bf16.msra.mxu0 %v144
    %156 = vmatpush.bf16.msra.mxu0 %v143
    %157 = vmatpush.bf16.msra.mxu0 %v142
    %158 = vmatpush.bf16.msra.mxu0 %v141
    %159 = vmatpush.bf16.msra.mxu0 %v140
    %160 = vmatpush.bf16.msra.mxu0 %v139
    %161 = vmatpush.bf16.msra.mxu0 %v138
    %162 = vmatmul.bf16.gmra.mxu0 %v104
    %v163 = vpop.f32.mrf.mxu0
    %v164 = vadd.f32 %v98, %v163
    %v165 = vpop.f32.mrf.mxu0
    %v166 = vadd.f32 %v98, %v165
    %167 = vdwg.mxu0
    %v168 = vmul.f32 %v164, 0.5
    %v169 = vmul.f32 %v166, 0.5
    %v170 = vmul.f32 %v164, 0.70710677
    %v171 = vmul.f32 %v166, 0.70710677
    %v172 = vmul.f32 %v170, %v170
    %v173 = vmin.f32 16.0, %v172
    %v174 = vmul.f32 %v173, 2.1237322e-06
    %v175 = vadd.f32 %v174, 0.00028619796
    %v176 = vmul.f32 %v173, %v175
    %v177 = vadd.f32 %v176, 0.0036580483
    %v178 = vmul.f32 %v173, %v177
    %v179 = vadd.f32 %v178, 0.05243302
    %v180 = vmul.f32 %v173, %v179
    %v181 = vadd.f32 %v180, 0.18741608
    %v182 = vmul.f32 %v173, %v181
    %v183 = vadd.f32 %v182, 1.1283791
    %v184 = vmul.f32 %v170, %v183
    %v185 = vmul.f32 %v173, 3.8918573e-05
    %v186 = vadd.f32 %v185, 0.001143296
    %v187 = vmul.f32 %v173, %v186
    %v188 = vadd.f32 %v187, 0.014752088
    %v189 = vmul.f32 %v173, %v188
    %v190 = vadd.f32 %v189, 0.112945676
    %v191 = vmul.f32 %v173, %v190
    %v192 = vadd.f32 %v191, 0.4994258
    %v193 = vmul.f32 %v173, %v192
    %v194 = vadd.f32 %v193, 1.0
    %v195 = vrcp.pop %v194
    %v196 = vmul.f32 %v194, %v195
    %v197 = vsub.f32 1.0, %v196
    %v198 = vmul.f32 %v195, %v197
    %v199 = vadd.f32 %v195, %v198
    %vm200 = vweird.f32 %v194
    %vm201 = vweird.f32 %v195
    %vm202 = vmor %vm200, %vm201
    %v203 = vsel %vm202, %v195, %v199
    %v204 = vand.u32 2147483647, %v194
    %vm205 = vcmp.eq.f32.partialorder %v204, 8.507059e+37
    %v206 = vand.u32 %v194, 2147483648
    %v207 = vor.u32 1.1754944e-38, %v206
    %v208 = vsel %vm205, %v207, %v203
    %v209 = vmul.f32 %v184, %v208
    %v210 = vmin.f32 %v209, 1.0
    %v211 = vmax.f32 %v210, -1.0
    %v212 = vmul.f32 %v171, %v171
    %v213 = vmin.f32 16.0, %v212
    %v214 = vmul.f32 %v213, 2.1237322e-06
    %v215 = vadd.f32 %v214, 0.00028619796
    %v216 = vmul.f32 %v213, %v215
    %v217 = vadd.f32 %v216, 0.0036580483
    %v218 = vmul.f32 %v213, %v217
    %v219 = vadd.f32 %v218, 0.05243302
    %v220 = vmul.f32 %v213, %v219
    %v221 = vadd.f32 %v220, 0.18741608
    %v222 = vmul.f32 %v213, %v221
    %v223 = vadd.f32 %v222, 1.1283791
    %v224 = vmul.f32 %v171, %v223
    %v225 = vmul.f32 %v213, 3.8918573e-05
    %v226 = vadd.f32 %v225, 0.001143296
    %v227 = vmul.f32 %v213, %v226
    %v228 = vadd.f32 %v227, 0.014752088
    %v229 = vmul.f32 %v213, %v228
    %v230 = vadd.f32 %v229, 0.112945676
    %v231 = vmul.f32 %v213, %v230
    %v232 = vadd.f32 %v231, 0.4994258
    %v233 = vmul.f32 %v213, %v232
    %v234 = vadd.f32 %v233, 1.0
    %v235 = vrcp.pop %v234
    %v236 = vmul.f32 %v234, %v235
    %v237 = vsub.f32 1.0, %v236
    %v238 = vmul.f32 %v235, %v237
    %v239 = vadd.f32 %v235, %v238
    %vm240 = vweird.f32 %v234
    %vm241 = vweird.f32 %v235
    %vm242 = vmor %vm240, %vm241
    %v243 = vsel %vm242, %v235, %v239
    %v244 = vand.u32 2147483647, %v234
    %vm245 = vcmp.eq.f32.partialorder %v244, 8.507059e+37
    %v246 = vand.u32 %v234, 2147483648
    %v247 = vor.u32 1.1754944e-38, %v246
    %v248 = vsel %vm245, %v247, %v243
    %v249 = vmul.f32 %v224, %v248
    %v250 = vmin.f32 %v249, 1.0
    %v251 = vmax.f32 %v250, -1.0
    %v252 = vadd.f32 %v211, 1.0
    %v253 = vadd.f32 %v251, 1.0
    %v254 = vmul.f32 %v168, %v252
    %v255 = vmul.f32 %v169, %v253
    %v256 = vld [vmem:[#allocation2] sm:$0xff]
    %v257 = vld [vmem:[#allocation2 + $0x8] sm:$0xff]
    %v258 = vpack.c.bf16 %v255, %v254
    %v259 = vld [vmem:[#allocation8] sm:$0xf]
    %v260 = vld [vmem:[#allocation8 + $0x4] sm:$0xf]
    %v261 = vld [vmem:[#allocation8 + $0x8] sm:$0xf]
    %v262 = vld [vmem:[#allocation8 + $0xc] sm:$0xf]
    %v263 = vld [vmem:[#allocation8 + $0x10] sm:$0xf]
    %v264 = vld [vmem:[#allocation8 + $0x14] sm:$0xf]
    %v265 = vld [vmem:[#allocation8 + $0x18] sm:$0xf]
    %v266 = vld [vmem:[#allocation8 + $0x1c] sm:$0xf]
    %v267 = vld [vmem:[#allocation8 + $0x20] sm:$0xf]
    %v268 = vld [vmem:[#allocation8 + $0x24] sm:$0xf]
    %v269 = vld [vmem:[#allocation8 + $0x28] sm:$0xf]
    %v270 = vld [vmem:[#allocation8 + $0x2c] sm:$0xf]
    %v271 = vld [vmem:[#allocation8 + $0x30] sm:$0xf]
    %v272 = vld [vmem:[#allocation8 + $0x34] sm:$0xf]
    %v273 = vld [vmem:[#allocation8 + $0x38] sm:$0xf]
    %v274 = vld [vmem:[#allocation8 + $0x3c] sm:$0xf]
    %v291 = vunpack.c.l.b16 %v259
    %v292 = vunpack.c.l.b16 %v260
    %v293 = vunpack.c.l.b16 %v261
    %v294 = vunpack.c.l.b16 %v262
    %v295 = vunpack.c.l.b16 %v263
    %v296 = vunpack.c.l.b16 %v264
    %v297 = vunpack.c.l.b16 %v265
    %v298 = vunpack.c.l.b16 %v266
    %v299 = vunpack.c.l.b16 %v267
    %v300 = vunpack.c.l.b16 %v268
    %v301 = vunpack.c.l.b16 %v269
    %v302 = vunpack.c.l.b16 %v270
    %v303 = vunpack.c.l.b16 %v271
    %v304 = vunpack.c.l.b16 %v272
    %v305 = vunpack.c.l.b16 %v273
    %v306 = vunpack.c.l.b16 %v274
    %v307 = vpack.c.b16 %v292, %v291
    %v308 = vpack.c.b16 %v294, %v293
    %v309 = vpack.c.b16 %v296, %v295
    %v310 = vpack.c.b16 %v298, %v297
    %v311 = vpack.c.b16 %v300, %v299
    %v312 = vpack.c.b16 %v302, %v301
    %v313 = vpack.c.b16 %v304, %v303
    %v314 = vpack.c.b16 %v306, %v305
    %323 = vmatpush.bf16.msra.mxu0 %v314
    %324 = vmatpush.bf16.msra.mxu0 %v313
    %325 = vmatpush.bf16.msra.mxu0 %v312
    %326 = vmatpush.bf16.msra.mxu0 %v311
    %327 = vmatpush.bf16.msra.mxu0 %v310
    %328 = vmatpush.bf16.msra.mxu0 %v309
    %329 = vmatpush.bf16.msra.mxu0 %v308
    %330 = vmatpush.bf16.msra.mxu0 %v307
    %331 = vmatmul.bf16.gmra.mxu0 %v258
    %v332 = vpop.f32.mrf.mxu0
    %v333 = vadd.f32 0.0, %v332
    %v334 = vpop.f32.mrf.mxu0
    %v335 = vadd.f32 0.0, %v334
    %336 = vdwg.mxu0
    %v337 = vadd.f32 %v256, %v333
    %v338 = vadd.f32 %v257, %v335
    %339 = vst [vmem:[#allocation2] sm:$0xff] %v337
    %340 = vst [vmem:[#allocation2 + $0x8] sm:$0xff] %v338
    // Predicated region
    $region38: #{tpu_custom_call.1} parent=1 // pred_check
      %p341 = pneg %p68
    $region39: #{tpu_custom_call.1} parent=1 // pred_check_branch
      %343 = sbr.rel (%p341) target = $region41
    $region40: #{tpu_custom_call.1} parent=1 // pred_region
      %v344 = vld [vmem:[#allocation2] sm:$0xff]
      %v345 = vld [vmem:[#allocation2 + $0x8] sm:$0xff]
      %346 = vst [vmem:[#allocation9] sm:$0xff] %v344
      %347 = vst [vmem:[#allocation9 + $0x8] sm:$0xff] %v345
    $region41: #{tpu_custom_call.1} parent=1 // pred_fallthru
      _
    // Predicated region
    $region42: #{tpu_custom_call.1} parent=1 // pred_check
      _
    $region43: #{tpu_custom_call.1} parent=1 // pred_check_branch
      %349 = sbr.rel (0) target = $region45
    $region44: #{tpu_custom_call.1} parent=1 // pred_region
      %351 = vsyncadd [#allocation5], 0
      %s352 = sshll.u32 [#allocation9], 4
      %s353 = int_to_ptr.vmem [resolvable:$true] %s352
      %s354 = sshll.u32 %s5, 4
      %s355 = int_to_ptr.hbm [resolvable:$true] %s354
      %360 = dma.vmem_to_hbm [thread:$0]  %s353, 256, %s355, [#allocation5], 128, 128, 8
    $region45: #{tpu_custom_call.1} parent=1 // pred_fallthru
      _
    // Predicated region
    $region46: #{tpu_custom_call.1} parent=1 // pred_check
      _
    $region47: #{tpu_custom_call.1} parent=1 // pred_check_branch
      %362 = sbr.rel (0) target = $region49
    $region48: #{tpu_custom_call.1} parent=1 // pred_region
      %364 = dma.done [#allocation5], 256
    $region49: #{tpu_custom_call.1} parent=1 // pred_fallthru
      _
    %365 = vsyncpa [#allocation4], 1
    %366 = vsyncpa [#allocation7], 1
    %367 = vsyncpa [#allocation5], 1

</llo_original>
